<compile_context>
chip_gen: v6e
topology: v6e:2x2x1
jax: 0.10.0
libtpu: 0.0.40
codegen_flags: <defaults>
</compile_context>

<pallas_src>
import functools
import math

import jax
import jax.numpy as jnp
from jax import lax
from jax.experimental import pallas as pl
from jax.experimental.pallas import tpu as pltpu


_CHUNK = 8192      # lanes per inner step: bounds the (H, chunk) f32 live range to ~1 MiB
_MAX_TB = 262144   # hard cap on the batch tile (double-buffered tiles <= ~26 MiB f32)


def _round_up(x, m):
    return ((x + m - 1) // m) * m


def _mlp_t_kernel(xt_ref, w1_ref, b1_ref, w2_ref, b2_ref, o_ref, *, chunk):
    # Transposed problem for one batch tile:
    #   xt: (obs, TB), w1: (H, obs), b1: (H, 1), w2: (A, H), b2: (A, 1), o: (A, TB)
    w1 = w1_ref[...]
    w2 = w2_ref[...]
    b1 = b1_ref[...].astype(jnp.float32)
    b2 = b2_ref[...].astype(jnp.float32)

    tb = xt_ref.shape[-1]
    n_full = tb // chunk
    rem = tb - n_full * chunk          # static; multiple of 128 by construction

    def _one_chunk(off, width):
        xt = xt_ref[:, pl.ds(off, width)]                            # (obs, width)
        h = jnp.dot(w1, xt, preferred_element_type=jnp.float32)      # (H, width) f32
        h = jnp.maximum(h + b1, 0.0)                                 # bias + ReLU, f32
        y = jnp.dot(w2, h.astype(w2.dtype),
                    preferred_element_type=jnp.float32)              # (A, width) f32
        o_ref[:, pl.ds(off, width)] = (y + b2).astype(o_ref.dtype)

    if n_full > 0:
        def body(c, carry):
            off = pl.multiple_of(c * chunk, 128)
            _one_chunk(off, chunk)
            return carry
        lax.fori_loop(0, n_full, body, 0, unroll=n_full <= 2)
    if rem > 0:
        _one_chunk(n_full * chunk, rem)


@functools.partial(jax.jit, static_argnames=("block_b", "use_bf16_x"))
def dense_nn_1h(x, w1, b1, w2, b2, *, block_b=131072, use_bf16_x=False):
    """Forward pass of DenseNN_1h: relu(x @ W1^T + b1) @ W2^T + b2.

    x : (B, obs)  float32
    w1: (hidden, obs)     (PyTorch nn.Linear layout), b1: (hidden,)
    w2: (actions, hidden) (PyTorch nn.Linear layout), b2: (actions,)
    returns (B, actions) in x.dtype.

    block_b: target batch-tile size in lanes.  Default 131072 suits v5e/v6e/v7x;
    v7x users with very large batches can raise it up to 262144.
    """
    B, obs = x.shape
    H = w1.shape[0]
    A = w2.shape[0]
    out_dtype = x.dtype

    # ---- batch tiling: lane-aligned (x128), large, balanced across grid tiles ----
    tb_init = min(_round_up(max(min(block_b, B), 1), 128), _MAX_TB)
    num_tiles = -(-B // tb_init)                       # ceil
    TB = _round_up(-(-B // num_tiles), 128)            # balanced tile, multiple of 128
    Bp = TB * num_tiles
    chunk = min(_CHUNK, TB)                            # TB, chunk both multiples of 128

    compute_dtype = jnp.bfloat16 if use_bf16_x else x.dtype

    # Transposed problem: the (large) batch axis lives on the lane dimension inside
    # the kernel, so x^T streaming and the y^T output tiles are fully lane-dense.
    xt = x.T if Bp == B else jnp.pad(x, ((0, Bp - B), (0, 0))).T     # (obs, Bp)
    xt = xt.astype(compute_dtype)
    w1c = w1.astype(compute_dtype)
    w2c = w2.astype(compute_dtype)
    b1c = b1.reshape(H, 1).astype(jnp.float32)
    b2c = b2.reshape(A, 1).astype(jnp.float32)

    # VMEM: double-buffered x/out tiles + per-chunk intermediates + headroom.
    in_bytes = jnp.dtype(compute_dtype).itemsize
    out_bytes = jnp.dtype(out_dtype).itemsize
    vmem_need = (2 * obs * TB * in_bytes            # x^T tile, double-buffered
                 + 2 * A * TB * out_bytes           # y^T tile, double-buffered
                 + 2 * (H + A) * chunk * 4          # in-kernel f32 intermediates
                 + (4 << 20))                       # weights + compiler headroom
    vmem_limit = int(min(max(vmem_need, 16 << 20), 48 << 20))

    flops = 2 * Bp * (obs * H + H * A)
    bytes_accessed = (Bp * obs * in_bytes + Bp * A * out_bytes
                      + (w1.size + w2.size) * in_bytes + (b1.size + b2.size) * 4)
    cost = pl.CostEstimate(flops=flops, transcendentals=0,
                           bytes_accessed=bytes_accessed)

    kernel = functools.partial(_mlp_t_kernel, chunk=chunk)

    yt = pl.pallas_call(
        kernel,
        out_shape=jax.ShapeDtypeStruct((A, Bp), out_dtype),
        grid=(num_tiles,),
        in_specs=[
            pl.BlockSpec((obs, TB), lambda i: (0, i)),   # x^T streamed per batch tile
            pl.BlockSpec((H, obs), lambda i: (0, 0)),    # weights resident in VMEM
            pl.BlockSpec((H, 1), lambda i: (0, 0)),
            pl.BlockSpec((A, H), lambda i: (0, 0)),
            pl.BlockSpec((A, 1), lambda i: (0, 0)),
        ],
        out_specs=pl.BlockSpec((A, TB), lambda i: (0, i)),  # lane-dense output tile
        compiler_params=pltpu.CompilerParams(
            dimension_semantics=("parallel",),           # megacore-shard batch on v7x
            vmem_limit_bytes=vmem_limit,
        ),
        cost_estimate=cost,
    )(xt, w1c, b1c, w2c, b2c)

    return yt.T[:B]                                      # back to public (B, A) layout


def init_params(key, obs_size, hidden_size, actions_size):
    """Deterministic init mimicking PyTorch nn.Linear defaults (PyTorch layouts)."""
    k1, k2, k3, k4 = jax.random.split(key, 4)
    bound1 = 1.0 / math.sqrt(obs_size)
    bound2 = 1.0 / math.sqrt(hidden_size)
    w1 = jax.random.uniform(k1, (hidden_size, obs_size), jnp.float32, -bound1, bound1)
    b1 = jax.random.uniform(k2, (hidden_size,), jnp.float32, -bound1, bound1)
    w2 = jax.random.uniform(k3, (actions_size, hidden_size), jnp.float32, -bound2, bound2)
    b2 = jax.random.uniform(k4, (actions_size,), jnp.float32, -bound2, bound2)
    return w1, b1, w2, b2


def reference(x, w1, b1, w2, b2):
    h = jnp.maximum(x @ w1.T + b1, 0.0)
    return h @ w2.T + b2


if __name__ == "__main__":
    obs_size, hidden_size, actions_size = 8, 32, 4

    key = jax.random.PRNGKey(0)
    kx, kp = jax.random.split(key)
    w1, b1, w2, b2 = init_params(kp, obs_size, hidden_size, actions_size)

    # Small batch (module-scale example): single tile, single chunk.
    x = jax.random.normal(kx, (2, obs_size), jnp.float32)
    out = jax.block_until_ready(dense_nn_1h(x, w1, b1, w2, b2))
    ref = reference(x, w1, b1, w2, b2)
    assert out.shape == (2, actions_size)
    assert jnp.allclose(out, ref, atol=1e-5, rtol=1e-5), "mismatch (small batch)"

    # Multiple grid tiles (small block_b) and a non-multiple-of-128 batch.
    xb = jax.random.normal(kx, (1000, obs_size), jnp.float32)
    outb = jax.block_until_ready(dense_nn_1h(xb, w1, b1, w2, b2, block_b=256))
    refb = reference(xb, w1, b1, w2, b2)
    assert outb.shape == (1000, actions_size)
    assert jnp.allclose(outb, refb, atol=1e-5, rtol=1e-5), "mismatch (tiled batch)"

    # Batch large enough to exercise the in-kernel chunk loop, remainder chunk and
    # batch padding at the default (large) tile size.
    xc = jax.random.normal(kx, (20000, obs_size), jnp.float32)
    outc = jax.block_until_ready(dense_nn_1h(xc, w1, b1, w2, b2))
    refc = reference(xc, w1, b1, w2, b2)
    assert outc.shape == (20000, actions_size)
    assert jnp.allclose(outc, refc, atol=1e-4, rtol=1e-4), "mismatch (large batch)"

    print("KERNEL_OK")
</pallas_src>

<mosaic_0001>
module attributes {stable_mosaic.version = 11 : i64} {
  func.func @_mlp_t_kernel(%arg0: i32, %arg1: memref<8x128xf32, #tpu.memory_space<vmem>>, %arg2: memref<32x8xf32, #tpu.memory_space<vmem>>, %arg3: memref<32x1xf32, #tpu.memory_space<vmem>>, %arg4: memref<4x32xf32, #tpu.memory_space<vmem>>, %arg5: memref<4x1xf32, #tpu.memory_space<vmem>>, %arg6: memref<4x128xf32, #tpu.memory_space<vmem>>) attributes {dimension_semantics = [#tpu.dimension_semantics<parallel>], iteration_bounds = array<i64: 1>, scalar_prefetch = 0 : i64, scratch_operands = 0 : i64, tpu.core_type = #tpu.core_type<tc>, window_params = [{transform_indices = @transform_0, window_bounds = array<i64: 8, 128>}, {pipeline_mode = #tpu.pipeline_mode<synchronous>, transform_indices = @transform_1, window_bounds = array<i64: 32, 8>}, {pipeline_mode = #tpu.pipeline_mode<synchronous>, transform_indices = @transform_2, window_bounds = array<i64: 32, 1>}, {pipeline_mode = #tpu.pipeline_mode<synchronous>, transform_indices = @transform_3, window_bounds = array<i64: 4, 32>}, {pipeline_mode = #tpu.pipeline_mode<synchronous>, transform_indices = @transform_4, window_bounds = array<i64: 4, 1>}, {transform_indices = @transform_5, window_bounds = array<i64: 4, 128>}]} {
    %c0 = arith.constant 0 : index
    %c0_0 = arith.constant 0 : index
    %0 = vector.load %arg2[%c0, %c0_0] : memref<32x8xf32, #tpu.memory_space<vmem>>, vector<32x8xf32>
    %c0_1 = arith.constant 0 : index
    %c0_2 = arith.constant 0 : index
    %1 = vector.load %arg4[%c0_1, %c0_2] : memref<4x32xf32, #tpu.memory_space<vmem>>, vector<4x32xf32>
    %c0_3 = arith.constant 0 : index
    %c0_4 = arith.constant 0 : index
    %2 = vector.load %arg3[%c0_3, %c0_4] : memref<32x1xf32, #tpu.memory_space<vmem>>, vector<32x1xf32>
    %c0_5 = arith.constant 0 : index
    %c0_6 = arith.constant 0 : index
    %3 = vector.load %arg5[%c0_5, %c0_6] : memref<4x1xf32, #tpu.memory_space<vmem>>, vector<4x1xf32>
    %c0_i32 = arith.constant 0 : i32
    %c128_i32 = arith.constant 128 : i32
    %4 = arith.muli %c0_i32, %c128_i32 : i32
    %5 = tpu.assume_multiple %4, 128 : i32
    %c0_7 = arith.constant 0 : index
    %6 = arith.index_cast %5 : i32 to index
    %7 = vector.load %arg1[%c0_7, %6] : memref<8x128xf32, #tpu.memory_space<vmem>>, vector<8x128xf32>
    %cst = arith.constant dense<0.000000e+00> : vector<32x128xf32>
    %8 = tpu.matmul %0, %7, %cst {dimension_numbers = #tpu.dot_dimension_numbers<[1], [0], [0], [1], [0, 0, 1, 1], [], []>} : vector<32x8xf32>, vector<8x128xf32>, vector<32x128xf32> -> vector<32x128xf32>
    %9 = vector.broadcast %2 : vector<32x1xf32> to vector<32x128xf32>
    %10 = arith.addf %8, %9 : vector<32x128xf32>
    %cst_8 = arith.constant 0.000000e+00 : f32
    %11 = vector.broadcast %cst_8 : f32 to vector<32x128xf32>
    %12 = arith.maximumf %10, %11 : vector<32x128xf32>
    %cst_9 = arith.constant dense<0.000000e+00> : vector<4x128xf32>
    %13 = tpu.matmul %1, %12, %cst_9 {dimension_numbers = #tpu.dot_dimension_numbers<[1], [0], [0], [1], [0, 0, 1, 1], [], []>} : vector<4x32xf32>, vector<32x128xf32>, vector<4x128xf32> -> vector<4x128xf32>
    %14 = vector.broadcast %3 : vector<4x1xf32> to vector<4x128xf32>
    %15 = arith.addf %13, %14 : vector<4x128xf32>
    %c0_10 = arith.constant 0 : index
    %16 = arith.index_cast %5 : i32 to index
    %17 = vector.load %arg6[%c0_10, %16] : memref<4x128xf32, #tpu.memory_space<vmem>>, vector<4x128xf32>
    tpu.vector_store %arg6[%c0_10, %16], %15 {strides = array<i32>} : memref<4x128xf32, #tpu.memory_space<vmem>>, vector<4x128xf32>,
    %c1_i32 = arith.constant 1 : i32
    return
  }
  func.func @transform_0(%arg0: i32) -> (i32, i32) {
    %c0_i32 = arith.constant 0 : i32
    %c0_i32_0 = arith.constant 0 : i32
    return %c0_i32, %arg0 : i32, i32
  }
  func.func @transform_1(%arg0: i32) -> (i32, i32) {
    %c0_i32 = arith.constant 0 : i32
    %c0_i32_0 = arith.constant 0 : i32
    %c0_i32_1 = arith.constant 0 : i32
    return %c0_i32, %c0_i32_0 : i32, i32
  }
  func.func @transform_2(%arg0: i32) -> (i32, i32) {
    %c0_i32 = arith.constant 0 : i32
    %c0_i32_0 = arith.constant 0 : i32
    %c0_i32_1 = arith.constant 0 : i32
    return %c0_i32, %c0_i32_0 : i32, i32
  }
  func.func @transform_3(%arg0: i32) -> (i32, i32) {
    %c0_i32 = arith.constant 0 : i32
    %c0_i32_0 = arith.constant 0 : i32
    %c0_i32_1 = arith.constant 0 : i32
    return %c0_i32, %c0_i32_0 : i32, i32
  }
  func.func @transform_4(%arg0: i32) -> (i32, i32) {
    %c0_i32 = arith.constant 0 : i32
    %c0_i32_0 = arith.constant 0 : i32
    %c0_i32_1 = arith.constant 0 : i32
    return %c0_i32, %c0_i32_0 : i32, i32
  }
  func.func @transform_5(%arg0: i32) -> (i32, i32) {
    %c0_i32 = arith.constant 0 : i32
    %c0_i32_0 = arith.constant 0 : i32
    return %c0_i32, %arg0 : i32, i32
  }
}

</mosaic_0001>

<llo_original>
// kernel: dense_nn_1h.1
$region0: #{dense_nn_1h.1}
  #allocation0 [shape = 'u32[]', space=smem, size = 0x4, offset = 0x4, fixed_abs, tag = 'smem constant byte address 0x4 - core index']
  #allocation1 [shape = 'u32[144,128]{1,0:T(1,128)}', space=vmem, size = 0x12000, scoped, tag = 'internal scratch']
  %s0 = inlined_call_operand.vmem [shape: f32[8,128], index: 0, kind: input, shape index: {}]
  %s1 = inlined_call_operand.vmem [shape: f32[32,8], index: 1, kind: input, shape index: {}]
  %s2 = inlined_call_operand.vmem [shape: f32[32,1], index: 2, kind: input, shape index: {}]
  %s3 = inlined_call_operand.vmem [shape: f32[4,32], index: 3, kind: input, shape index: {}]
  %s4 = inlined_call_operand.vmem [shape: f32[4,1], index: 4, kind: input, shape index: {}]
  %s5 = inlined_call_operand.vmem [shape: f32[4,128], index: 5, kind: output, shape index: {}]
  %s6 = sld [smem:[#allocation0]]
  $region30: #{dense_nn_1h.1} parent=0
    _
  %s8 = ssub.s32 1, %s6
  %s9 = scalar_select 0, %s8, %s6
  // Predicated region
  $region2: #{dense_nn_1h.1} parent=0 // pred_check
    _
  $region3: #{dense_nn_1h.1} parent=0 // pred_check_branch
    %11 = sbr.rel (0) target = $region5
  $region4: #{dense_nn_1h.1} parent=0 // pred_region
    _
  $region5: #{dense_nn_1h.1} parent=0 // pred_fallthru
    _
  // Predicated region
  $region6: #{dense_nn_1h.1} parent=0 // pred_check
    _
  $region7: #{dense_nn_1h.1} parent=0 // pred_check_branch
    %13 = sbr.rel (0) target = $region9
  $region8: #{dense_nn_1h.1} parent=0 // pred_region
    _
  $region9: #{dense_nn_1h.1} parent=0 // pred_fallthru
    _
  // Predicated region
  $region10: #{dense_nn_1h.1} parent=0 // pred_check
    _
  $region11: #{dense_nn_1h.1} parent=0 // pred_check_branch
    %15 = sbr.rel (0) target = $region13
  $region12: #{dense_nn_1h.1} parent=0 // pred_region
    _
  $region13: #{dense_nn_1h.1} parent=0 // pred_fallthru
    _
  // Predicated region
  $region14: #{dense_nn_1h.1} parent=0 // pred_check
    _
  $region15: #{dense_nn_1h.1} parent=0 // pred_check_branch
    %17 = sbr.rel (0) target = $region17
  $region16: #{dense_nn_1h.1} parent=0 // pred_region
    _
  $region17: #{dense_nn_1h.1} parent=0 // pred_fallthru
    _
  // Predicated region
  $region18: #{dense_nn_1h.1} parent=0 // pred_check
    _
  $region19: #{dense_nn_1h.1} parent=0 // pred_check_branch
    %19 = sbr.rel (0) target = $region21
  $region20: #{dense_nn_1h.1} parent=0 // pred_region
    _
  $region21: #{dense_nn_1h.1} parent=0 // pred_fallthru
    _
  %v20 = vld [vmem:[%s1] sm:$0xff]
  %v21 = vld [vmem:[%s1 + $0x8] sm:$0xff]
  %v22 = vld [vmem:[%s1 + $0x10] sm:$0xff]
  %v23 = vld [vmem:[%s1 + $0x18] sm:$0xff]
  %v24 = vld [vmem:[%s3] sm:$0xf]
  %v25 = vld [vmem:[%s2] sm:$0xff]
  %v26 = vld [vmem:[%s2 + $0x8] sm:$0xff]
  %v27 = vld [vmem:[%s2 + $0x10] sm:$0xff]
  %v28 = vld [vmem:[%s2 + $0x18] sm:$0xff]
  %v29 = vld [vmem:[%s4] sm:$0xf]
  %v30 = vld [vmem:[%s0] sm:$0xff]
  %32 = vset.pattern.permute.xlu0 0
  %33 = vperm.xlu0 %32, %v25
  %v34 = vpop.permute.xlu0 %33
  %37 = vset.pattern.permute.xlu0 0
  %38 = vperm.xlu0 %37, %v26
  %v39 = vpop.permute.xlu0 %38
  %42 = vset.pattern.permute.xlu0 0
  %43 = vperm.xlu0 %42, %v27
  %v44 = vpop.permute.xlu0 %43
  %47 = vset.pattern.permute.xlu0 0
  %48 = vperm.xlu0 %47, %v28
  %v49 = vpop.permute.xlu0 %48
  %vm51 = vcmask 64512
  %v53 = vsel %vm51, %v20, 0
  %v56 = vsel %vm51, %v21, 0
  %v59 = vsel %vm51, %v22, 0
  %v62 = vsel %vm51, %v23, 0
  %64 = vmatprep.subr.mxu0 0.0
  %65 = vmatpush1.msra.mxu0 0.0
  %66 = vmatprep.subr.mxu0 0.0
  %67 = vmatpush1.msra.mxu0 0.0
  %68 = vmatprep.subr.mxu0 0.0
  %69 = vmatpush1.msra.mxu0 0.0
  %70 = vmatprep.subr.mxu0 0.0
  %71 = vmatpush1.msra.mxu0 0.0
  %72 = vmatprep.subr.mxu0 0.0
  %73 = vmatpush1.msra.mxu0 0.0
  %74 = vmatprep.subr.mxu0 0.0
  %75 = vmatpush1.msra.mxu0 0.0
  %76 = vmatprep.subr.mxu0 0.0
  %77 = vmatpush1.msra.mxu0 0.0
  %78 = vmatprep.subr.mxu0 0.0
  %79 = vmatpush1.msra.mxu0 0.0
  %80 = vmatprep.subr.mxu0 0.0
  %81 = vmatpush1.msra.mxu0 0.0
  %82 = vmatprep.subr.mxu0 0.0
  %83 = vmatpush1.msra.mxu0 0.0
  %84 = vmatprep.subr.mxu0 0.0
  %85 = vmatpush1.msra.mxu0 0.0
  %86 = vmatprep.subr.mxu0 0.0
  %87 = vmatpush1.msra.mxu0 0.0
  %88 = vmatprep.subr.mxu0 0.0
  %89 = vmatpush1.msra.mxu0 0.0
  %90 = vmatprep.subr.mxu0 0.0
  %91 = vmatpush1.msra.mxu0 0.0
  %92 = vmatprep.subr.mxu0 0.0
  %93 = vmatpush1.msra.mxu0 0.0
  %94 = vmatprep.subr.mxu0 0.0
  %95 = vmatpush1.msra.mxu0 %v30
  %96 = vmatprep.subr.mxu0 0.0
  %97 = vmatpush2.msra.mxu0 0.0
  %98 = vmatprep.subr.mxu0 0.0
  %99 = vmatpush2.msra.mxu0 0.0
  %100 = vmatprep.subr.mxu0 0.0
  %101 = vmatpush2.msra.mxu0 0.0
  %102 = vmatprep.subr.mxu0 0.0
  %103 = vmatpush2.msra.mxu0 0.0
  %104 = vmatprep.subr.mxu0 0.0
  %105 = vmatpush2.msra.mxu0 0.0
  %106 = vmatprep.subr.mxu0 0.0
  %107 = vmatpush2.msra.mxu0 0.0
  %108 = vmatprep.subr.mxu0 0.0
  %109 = vmatpush2.msra.mxu0 0.0
  %110 = vmatprep.subr.mxu0 0.0
  %111 = vmatpush2.msra.mxu0 0.0
  %112 = vmatprep.subr.mxu0 0.0
  %113 = vmatpush2.msra.mxu0 0.0
  %114 = vmatprep.subr.mxu0 0.0
  %115 = vmatpush2.msra.mxu0 0.0
  %116 = vmatprep.subr.mxu0 0.0
  %117 = vmatpush2.msra.mxu0 0.0
  %118 = vmatprep.subr.mxu0 0.0
  %119 = vmatpush2.msra.mxu0 0.0
  %120 = vmatprep.subr.mxu0 0.0
  %121 = vmatpush2.msra.mxu0 0.0
  %122 = vmatprep.subr.mxu0 0.0
  %123 = vmatpush2.msra.mxu0 0.0
  %124 = vmatprep.subr.mxu0 0.0
  %125 = vmatpush2.msra.mxu0 0.0
  %126 = vmatprep.subr.mxu0 0.0
  %127 = vmatpush2.msra.mxu0 0.0
  %128 = vmatprep.mubr.f32.mxu0 0.0
  %129 = vmatmul.mubr.f32.gmra.mxu0 %v53
  %v130 = vpop.f32.mrf.mxu0
  %v131 = vadd.f32 %v34, %v130
  %v132 = vpop.f32.mrf.mxu0
  %133 = vmatprep.mubr.f32.mxu0 0.0
  %134 = vmatmul.mubr.f32.gmra.mxu0 %v56
  %v135 = vpop.f32.mrf.mxu0
  %v136 = vadd.f32 %v39, %v135
  %v137 = vpop.f32.mrf.mxu0
  %138 = vmatprep.mubr.f32.mxu0 0.0
  %139 = vmatmul.mubr.f32.gmra.mxu0 %v59
  %v140 = vpop.f32.mrf.mxu0
  %v141 = vadd.f32 %v44, %v140
  %v142 = vpop.f32.mrf.mxu0
  %143 = vmatprep.mubr.f32.mxu0 0.0
  %144 = vmatmul.mubr.f32.gmra.mxu0 %v62
  %v145 = vpop.f32.mrf.mxu0
  %v146 = vadd.f32 %v49, %v145
  %v147 = vpop.f32.mrf.mxu0
  %148 = vdwg.mxu0
  %v149 = vmax.f32 %v131, 0.0
  %v150 = vmax.f32 %v136, 0.0
  %v151 = vmax.f32 %v141, 0.0
  %v152 = vmax.f32 %v146, 0.0
  %154 = vset.pattern.permute.xlu0 0
  %155 = vperm.xlu0 %154, %v29
  %v156 = vpop.permute.xlu0 %155
  %vm158 = vcmask 261120
  %v160 = vsel %vm158, %v24, 0
  %162 = vmatprep.subr.mxu0 0.0
  %163 = vmatpush1.msra.mxu0 0.0
  %164 = vmatprep.subr.mxu0 0.0
  %165 = vmatpush1.msra.mxu0 0.0
  %166 = vmatprep.subr.mxu0 0.0
  %167 = vmatpush1.msra.mxu0 0.0
  %168 = vmatprep.subr.mxu0 0.0
  %169 = vmatpush1.msra.mxu0 0.0
  %170 = vmatprep.subr.mxu0 0.0
  %171 = vmatpush1.msra.mxu0 0.0
  %172 = vmatprep.subr.mxu0 0.0
  %173 = vmatpush1.msra.mxu0 0.0
  %174 = vmatprep.subr.mxu0 0.0
  %175 = vmatpush1.msra.mxu0 0.0
  %176 = vmatprep.subr.mxu0 0.0
  %177 = vmatpush1.msra.mxu0 0.0
  %178 = vmatprep.subr.mxu0 0.0
  %179 = vmatpush1.msra.mxu0 0.0
  %180 = vmatprep.subr.mxu0 0.0
  %181 = vmatpush1.msra.mxu0 0.0
  %182 = vmatprep.subr.mxu0 0.0
  %183 = vmatpush1.msra.mxu0 0.0
  %184 = vmatprep.subr.mxu0 0.0
  %185 = vmatpush1.msra.mxu0 0.0
  %186 = vmatprep.subr.mxu0 0.0
  %187 = vmatpush1.msra.mxu0 %v152
  %188 = vmatprep.subr.mxu0 0.0
  %189 = vmatpush1.msra.mxu0 %v151
  %190 = vmatprep.subr.mxu0 0.0
  %191 = vmatpush1.msra.mxu0 %v150
  %192 = vmatprep.subr.mxu0 0.0
  %193 = vmatpush1.msra.mxu0 %v149
  %194 = vmatprep.subr.mxu0 0.0
  %195 = vmatpush2.msra.mxu0 0.0
  %196 = vmatprep.subr.mxu0 0.0
  %197 = vmatpush2.msra.mxu0 0.0
  %198 = vmatprep.subr.mxu0 0.0
  %199 = vmatpush2.msra.mxu0 0.0
  %200 = vmatprep.subr.mxu0 0.0
  %201 = vmatpush2.msra.mxu0 0.0
  %202 = vmatprep.subr.mxu0 0.0
  %203 = vmatpush2.msra.mxu0 0.0
  %204 = vmatprep.subr.mxu0 0.0
  %205 = vmatpush2.msra.mxu0 0.0
  %206 = vmatprep.subr.mxu0 0.0
  %207 = vmatpush2.msra.mxu0 0.0
  %208 = vmatprep.subr.mxu0 0.0
  %209 = vmatpush2.msra.mxu0 0.0
  %210 = vmatprep.subr.mxu0 0.0
  %211 = vmatpush2.msra.mxu0 0.0
  %212 = vmatprep.subr.mxu0 0.0
  %213 = vmatpush2.msra.mxu0 0.0
  %214 = vmatprep.subr.mxu0 0.0
  %215 = vmatpush2.msra.mxu0 0.0
  %216 = vmatprep.subr.mxu0 0.0
  %217 = vmatpush2.msra.mxu0 0.0
  %218 = vmatprep.subr.mxu0 0.0
  %219 = vmatpush2.msra.mxu0 0.0
  %220 = vmatprep.subr.mxu0 0.0
  %221 = vmatpush2.msra.mxu0 0.0
  %222 = vmatprep.subr.mxu0 0.0
  %223 = vmatpush2.msra.mxu0 0.0
  %224 = vmatprep.subr.mxu0 0.0
  %225 = vmatpush2.msra.mxu0 0.0
  %226 = vmatprep.mubr.f32.mxu0 0.0
  %227 = vmatmul.mubr.f32.gmra.mxu0 %v160
  %v228 = vpop.f32.mrf.mxu0
  %v229 = vadd.f32 %v156, %v228
  %v230 = vpop.f32.mrf.mxu0
  %231 = vdwg.mxu0
  %232 = vst [vmem:[%s5] sm:$0xf] %v229
  // Predicated region
  $region22: #{dense_nn_1h.1} parent=0 // pred_check
    _
  $region23: #{dense_nn_1h.1} parent=0 // pred_check_branch
    %234 = sbr.rel (0) target = $region25
  $region24: #{dense_nn_1h.1} parent=0 // pred_region
    _
  $region25: #{dense_nn_1h.1} parent=0 // pred_fallthru
    _
  // Predicated region
  $region26: #{dense_nn_1h.1} parent=0 // pred_check
    _
  $region27: #{dense_nn_1h.1} parent=0 // pred_check_branch
    %236 = sbr.rel (0) target = $region29
  $region28: #{dense_nn_1h.1} parent=0 // pred_region
    _
  $region29: #{dense_nn_1h.1} parent=0 // pred_fallthru
    _

</llo_original>
